<compile_context>
chip_gen: v5e
topology: v5e:2x2
jax: 0.10.0
libtpu: 0.0.40
codegen_flags: <defaults>
</compile_context>

<pallas_src>
from typing import NamedTuple

import jax
import jax.numpy as jnp
from jax.experimental import pallas as pl
from jax.experimental.pallas import tpu as pltpu


# ----------------------------------------------------------------------------
# Helpers
# ----------------------------------------------------------------------------
def _round_up(x, m):
    return ((x + m - 1) // m) * m


def _cdiv(a, b):
    return -(-a // b)


def _sublane_packing(dtype):
    # Rows per packed vreg sublane: 8 for f32, 16 for bf16, 32 for int8/fp8.
    return max(8, 32 // jnp.dtype(dtype).itemsize)


def _vmem_budget_bytes():
    # ~75% of physical per-core VMEM (128 MiB v5e/v6e, 64 MiB per-TC v7x),
    # leaving headroom for Mosaic internal scratch.
    cap = 128 * 1024 * 1024
    try:
        info = pltpu.get_tpu_info()
        cap = int(getattr(info, "vmem_capacity_bytes", cap) or cap)
    except Exception:
        pass
    return (cap * 3) // 4


def _vmem_estimate(tm, tn, tk, nk, in_item, out_item):
    est = (
        2 * tm * tk * in_item      # double-buffered x tiles
        + 2 * tk * tn * in_item    # double-buffered w tiles
        + 2 * tm * tn * out_item   # double-buffered output tile
        + 2 * 8 * tn * 4           # bias tile: (1, tn) pads to 8 sublanes, 2 bufs
    )
    if nk > 1:
        est += tm * tn * 4         # f32 accumulator scratch
    return est


# ----------------------------------------------------------------------------
# Tiling plan (computed once per (B, K, N, dtype) configuration)
# ----------------------------------------------------------------------------
class LinearPlan(NamedTuple):
    tm: int
    tn: int
    tk: int
    Mp: int
    Kp: int
    Np: int
    nk: int
    vmem_limit: int
    in_dim: int
    out_dim: int
    compute_dtype: object
    out_dtype: object


def plan_linear(B, K, N, *, compute_dtype=jnp.float32, out_dtype=jnp.float32,
                tm=512, tn=512, tk=1024, allow_k_collapse=True):
    """Choose MXU/VMEM-friendly tiles for y = x @ w_t + b."""
    compute_dtype = jnp.dtype(compute_dtype)
    out_dtype = jnp.dtype(out_dtype)
    sub = _sublane_packing(compute_dtype)
    in_item = compute_dtype.itemsize
    out_item = out_dtype.itemsize
    budget = _vmem_budget_bytes()

    # Lane-dense output columns; prefer 256-multiples (v6e/v7x MXU is 2x256x256).
    n_align = 128 if N <= 128 else 256
    tn = min(tn, _round_up(N, n_align))
    # Sublane-aligned rows at the dtype packing granularity (16 for bf16, ...).
    tm = min(tm, _round_up(B, sub))

    # Reduction chunk: collapse the K axis entirely when full-K tiles fit the
    # VMEM budget (one matmul per output tile, no accumulator, no k loop).
    k_full = _round_up(K, 128)
    if allow_k_collapse and _vmem_estimate(tm, tn, k_full, 1, in_item, out_item) <= budget:
        tk = k_full
    else:
        tk = min(tk, k_full)
    nk = 1 if tk >= k_full else _cdiv(k_full, tk)

    # Shrink tiles (largest-first) until the estimate fits the budget.
    while _vmem_estimate(tm, tn, tk, nk, in_item, out_item) > budget:
        if tk > 128 and tk >= max(tm, tn):
            tk = max(128, _round_up(tk // 2, 128))
        elif tm > sub and tm >= tn:
            tm = max(sub, _round_up(tm // 2, sub))
        elif tn > 128:
            tn = max(128, _round_up(tn // 2, 128))
        elif tk > 128:
            tk = max(128, _round_up(tk // 2, 128))
        elif tm > sub:
            tm = max(sub, _round_up(tm // 2, sub))
        else:
            break
        nk = 1 if tk >= k_full else _cdiv(k_full, tk)

    Mp = _round_up(B, tm)
    Np = _round_up(N, tn)
    Kp = _round_up(K, tk)
    nk = Kp // tk

    # v7x has two TensorCores: make sure the parallel grid has >= 2 blocks
    # when the problem is big enough to split.
    if (Mp // tm) * (Np // tn) < 2:
        if B >= 2 * sub and tm >= 2 * sub:
            tm = _round_up(_cdiv(B, 2), sub)
            Mp = _round_up(B, tm)
        elif N >= 2 * 128 and tn >= 2 * 128:
            tn = _round_up(_cdiv(N, 2), 128)
            Np = _round_up(N, tn)

    vmem_limit = min(
        budget,
        max(16 * 1024 * 1024,
            (_vmem_estimate(tm, tn, tk, nk, in_item, out_item) * 5) // 4
            + 4 * 1024 * 1024),
    )
    return LinearPlan(tm, tn, tk, Mp, Kp, Np, nk, vmem_limit,
                      K, N, compute_dtype, out_dtype)


# ----------------------------------------------------------------------------
# Parameters (xavier-normal weight, zero bias) and one-time weight prep
# ----------------------------------------------------------------------------
def make_params(key, in_dim, out_dim):
    """Deterministic xavier-normal weight (nn.init.xavier_normal_) and zero bias."""
    std = (2.0 / (in_dim + out_dim)) ** 0.5
    # PyTorch weight shape is (out_dim, in_dim); store its transpose directly.
    w = jax.random.normal(key, (out_dim, in_dim), dtype=jnp.float32) * std
    return w.T, jnp.zeros((out_dim,), dtype=jnp.float32)   # (K, N), (N,)


def prepare_params(w_t, b, plan):
    """Hoisted weight-side work: cast to compute dtype and pad once at init."""
    K, N = w_t.shape
    assert (K, N) == (plan.in_dim, plan.out_dim)
    w_p = w_t.astype(plan.compute_dtype)
    if (plan.Kp, plan.Np) != (K, N):
        w_p = jnp.pad(w_p, ((0, plan.Kp - K), (0, plan.Np - N)))
    b_p = b.astype(jnp.float32).reshape(1, N)
    if plan.Np != N:
        b_p = jnp.pad(b_p, ((0, 0), (0, plan.Np - N)))
    return w_p, b_p


# ----------------------------------------------------------------------------
# Kernels
# ----------------------------------------------------------------------------
def _linear_kernel_fused_k(x_ref, w_ref, b_ref, o_ref):
    # Collapsed-K path: one matmul per output tile, no accumulator scratch.
    acc = jnp.dot(x_ref[...], w_ref[...], preferred_element_type=jnp.float32)
    o_ref[...] = (acc + b_ref[...]).astype(o_ref.dtype)


def _linear_kernel_multi_k(x_ref, w_ref, b_ref, o_ref, acc_ref):
    k = pl.program_id(2)
    partial = jnp.dot(x_ref[...], w_ref[...], preferred_element_type=jnp.float32)

    @pl.when(k == 0)          # direct overwrite: saves the zero-init store + add
    def _():
        acc_ref[...] = partial

    @pl.when(k > 0)
    def _():
        acc_ref[...] += partial

    @pl.when(k == pl.num_programs(2) - 1)
    def _():
        # Bias (already f32) added exactly once, then cast to output dtype.
        o_ref[...] = (acc_ref[...] + b_ref[...]).astype(o_ref.dtype)


# ----------------------------------------------------------------------------
# Forward wrapper (x-side padding only; weights/bias are pre-prepared)
# ----------------------------------------------------------------------------
def linear_forward(x, w_pad, b_pad, plan):
    """x: (B, in_dim) unpadded; w_pad: (Kp, Np); b_pad: (1, Np) f32."""
    B, K = x.shape
    assert K == plan.in_dim
    assert w_pad.shape == (plan.Kp, plan.Np)
    tm, tn, tk = plan.tm, plan.tn, plan.tk
    Mp, Kp, Np, nk = plan.Mp, plan.Kp, plan.Np, plan.nk
    assert Mp >= B

    x = x.astype(plan.compute_dtype)
    if (Mp, Kp) != (B, K):
        x = jnp.pad(x, ((0, Mp - B), (0, Kp - K)))

    in_item = plan.compute_dtype.itemsize
    out_item = plan.out_dtype.itemsize
    cost = pl.CostEstimate(
        flops=2 * B * plan.in_dim * plan.out_dim,
        transcendentals=0,
        bytes_accessed=(B * plan.in_dim * in_item + Kp * Np * in_item
                        + B * plan.out_dim * out_item + plan.out_dim * 4),
    )

    if nk == 1:
        out_padded = pl.pallas_call(
            _linear_kernel_fused_k,
            out_shape=jax.ShapeDtypeStruct((Mp, Np), plan.out_dtype),
            grid_spec=pl.GridSpec(
                grid=(Mp // tm, Np // tn),
                in_specs=[
                    pl.BlockSpec((tm, Kp), lambda i, j: (i, 0)),
                    pl.BlockSpec((Kp, tn), lambda i, j: (0, j)),
                    pl.BlockSpec((1, tn), lambda i, j: (0, j)),
                ],
                out_specs=pl.BlockSpec((tm, tn), lambda i, j: (i, j)),
            ),
            compiler_params=pltpu.CompilerParams(
                dimension_semantics=("parallel", "parallel"),
                vmem_limit_bytes=plan.vmem_limit,
            ),
            cost_estimate=cost,
        )(x, w_pad, b_pad)
    else:
        out_padded = pl.pallas_call(
            _linear_kernel_multi_k,
            out_shape=jax.ShapeDtypeStruct((Mp, Np), plan.out_dtype),
            grid_spec=pl.GridSpec(
                grid=(Mp // tm, Np // tn, nk),
                in_specs=[
                    pl.BlockSpec((tm, tk), lambda i, j, k: (i, k)),
                    pl.BlockSpec((tk, tn), lambda i, j, k: (k, j)),
                    pl.BlockSpec((1, tn), lambda i, j, k: (0, j)),
                ],
                out_specs=pl.BlockSpec((tm, tn), lambda i, j, k: (i, j)),
                scratch_shapes=[pltpu.VMEM((tm, tn), jnp.float32)],
            ),
            compiler_params=pltpu.CompilerParams(
                dimension_semantics=("parallel", "parallel", "arbitrary"),
                vmem_limit_bytes=plan.vmem_limit,
            ),
            cost_estimate=cost,
        )(x, w_pad, b_pad)

    if (Mp, Np) != (B, plan.out_dim):
        out_padded = out_padded[:B, :plan.out_dim]
    return out_padded


def linear_layer(x, w_t, b, *, compute_dtype=None, **plan_kwargs):
    """Convenience one-shot wrapper: plan + prepare + forward."""
    B, K = x.shape
    _, N = w_t.shape
    cdt = jnp.dtype(compute_dtype) if compute_dtype is not None else x.dtype
    plan = plan_linear(B, K, N, compute_dtype=cdt, out_dtype=x.dtype, **plan_kwargs)
    w_pad, b_pad = prepare_params(w_t, b, plan)
    return linear_forward(x, w_pad, b_pad, plan)


# ----------------------------------------------------------------------------
# Smoke test
# ----------------------------------------------------------------------------
if __name__ == "__main__":
    in_dim, out_dim, batch = 32, 16, 8
    key = jax.random.PRNGKey(0)
    kx, kw = jax.random.split(key)

    x = jax.random.normal(kx, (batch, in_dim), dtype=jnp.float32)
    w_t, b = make_params(kw, in_dim, out_dim)
    ref = x @ w_t + b

    # 1) f32 path, collapsed-K (single-matmul) kernel.
    out = jax.block_until_ready(linear_layer(x, w_t, b))
    assert out.shape == (batch, out_dim)
    assert jnp.allclose(out, ref, atol=1e-5, rtol=1e-5)

    # 2) bf16 compute path (v6e/v7x throughput mode), f32 accumulation.
    out_bf16 = jax.block_until_ready(linear_layer(x, w_t, b, compute_dtype=jnp.bfloat16))
    assert jnp.allclose(out_bf16, ref, atol=5e-2, rtol=5e-2)

    # 3) Multi-k accumulator path (forced small tk so the K grid axis exists).
    in_dim2, out_dim2, batch2 = 256, 128, 16
    kx2, kw2 = jax.random.split(jax.random.PRNGKey(1))
    x2 = jax.random.normal(kx2, (batch2, in_dim2), dtype=jnp.float32)
    w_t2, b2 = make_params(kw2, in_dim2, out_dim2)
    plan2 = plan_linear(batch2, in_dim2, out_dim2, compute_dtype=jnp.float32,
                        out_dtype=jnp.float32, tk=128, allow_k_collapse=False)
    assert plan2.nk > 1
    w2_pad, b2_pad = prepare_params(w_t2, b2, plan2)
    out2 = jax.block_until_ready(linear_forward(x2, w2_pad, b2_pad, plan2))
    ref2 = x2 @ w_t2 + b2
    assert jnp.allclose(out2, ref2, atol=1e-4, rtol=1e-4)

    print("KERNEL_OK")
</pallas_src>

<mosaic_0001>
module attributes {stable_mosaic.version = 11 : i64} {
  func.func @_linear_kernel_fused_k(%arg0: i32, %arg1: i32, %arg2: memref<8x128xf32, #tpu.memory_space<vmem>>, %arg3: memref<128x128xf32, #tpu.memory_space<vmem>>, %arg4: memref<1x128xf32, #tpu.memory_space<vmem>>, %arg5: memref<8x128xf32, #tpu.memory_space<vmem>>) attributes {dimension_semantics = [#tpu.dimension_semantics<parallel>, #tpu.dimension_semantics<parallel>], iteration_bounds = array<i64: 1, 1>, scalar_prefetch = 0 : i64, scratch_operands = 0 : i64, tpu.core_type = #tpu.core_type<tc>, window_params = [{transform_indices = @transform_0, window_bounds = array<i64: 8, 128>}, {transform_indices = @transform_1, window_bounds = array<i64: 128, 128>}, {transform_indices = @transform_2, window_bounds = array<i64: 1, 128>}, {transform_indices = @transform_3, window_bounds = array<i64: 8, 128>}]} {
    %c0 = arith.constant 0 : index
    %c0_0 = arith.constant 0 : index
    %0 = vector.load %arg2[%c0, %c0_0] : memref<8x128xf32, #tpu.memory_space<vmem>>, vector<8x128xf32>
    %c0_1 = arith.constant 0 : index
    %c0_2 = arith.constant 0 : index
    %1 = vector.load %arg3[%c0_1, %c0_2] : memref<128x128xf32, #tpu.memory_space<vmem>>, vector<128x128xf32>
    %cst = arith.constant dense<0.000000e+00> : vector<8x128xf32>
    %2 = tpu.matmul %0, %1, %cst {dimension_numbers = #tpu.dot_dimension_numbers<[1], [0], [0], [1], [0, 0, 1, 1], [], []>} : vector<8x128xf32>, vector<128x128xf32>, vector<8x128xf32> -> vector<8x128xf32>
    %c0_3 = arith.constant 0 : index
    %c0_4 = arith.constant 0 : index
    %3 = vector.load %arg4[%c0_3, %c0_4] : memref<1x128xf32, #tpu.memory_space<vmem>>, vector<1x128xf32>
    %4 = vector.broadcast %3 : vector<1x128xf32> to vector<8x128xf32>
    %5 = arith.addf %2, %4 : vector<8x128xf32>
    %c0_5 = arith.constant 0 : index
    %c0_6 = arith.constant 0 : index
    %6 = vector.load %arg5[%c0_5, %c0_6] : memref<8x128xf32, #tpu.memory_space<vmem>>, vector<8x128xf32>
    tpu.vector_store %arg5[%c0_5, %c0_6], %5 {strides = array<i32>} : memref<8x128xf32, #tpu.memory_space<vmem>>, vector<8x128xf32>,
    return
  }
  func.func @transform_0(%arg0: i32, %arg1: i32) -> (i32, i32) {
    %c0_i32 = arith.constant 0 : i32
    %c0_i32_0 = arith.constant 0 : i32
    return %arg0, %c0_i32 : i32, i32
  }
  func.func @transform_1(%arg0: i32, %arg1: i32) -> (i32, i32) {
    %c0_i32 = arith.constant 0 : i32
    %c0_i32_0 = arith.constant 0 : i32
    return %c0_i32, %arg1 : i32, i32
  }
  func.func @transform_2(%arg0: i32, %arg1: i32) -> (i32, i32) {
    %c0_i32 = arith.constant 0 : i32
    %c0_i32_0 = arith.constant 0 : i32
    return %c0_i32, %arg1 : i32, i32
  }
  func.func @transform_3(%arg0: i32, %arg1: i32) -> (i32, i32) {
    %c0_i32 = arith.constant 0 : i32
    return %arg0, %arg1 : i32, i32
  }
}

</mosaic_0001>

<llo_original>
// kernel: tpu_custom_call.1
$region0: #{tpu_custom_call.1}
  #allocation0 [shape = 'u32[]', space=smem, size = 0x4, offset = 0x4, fixed_abs, tag = 'smem constant byte address 0x4 - core index']
  #allocation1 [shape = 'u32[72,128]{1,0:T(1,128)}', space=vmem, size = 0x9000, scoped, tag = 'internal scratch']
  %s0 = inlined_call_operand.hbm [shape: f32[8,128], index: 0, kind: input, shape index: {}]
  %s1 = inlined_call_operand.hbm [shape: f32[128,128], index: 1, kind: input, shape index: {}]
  %s2 = inlined_call_operand.vmem [shape: f32[1,128], index: 2, kind: input, shape index: {}]
  %s3 = inlined_call_operand.hbm [shape: f32[8,128], index: 3, kind: output, shape index: {}]
  %s4 = sld [smem:[#allocation0]]
  $region30: #{tpu_custom_call.1} parent=0
    _
  %s6 = ssub.s32 1, %s4
  %s7 = scalar_select 0, %s6, %s4
  $region1: #{tpu_custom_call.1} parent=0
    #allocation2 [shape = 'u8[4096]{0}', space=vmem, size = 0x1000, scoped, tag = 'input window, operand 0, single buffered']
    #allocation3 [shape = 's32[1]{0}', space=sflag, size = 0x4, scoped, tag = 'scoped memory for tpu_custom_call.1']
    #allocation4 [shape = 's32[1]{0}', space=sflag, size = 0x4, scoped, tag = 'scoped memory for tpu_custom_call.1']
    #allocation5 [shape = 'u8[65536]{0}', space=vmem, size = 0x10000, scoped, tag = 'input window, operand 1, single buffered']
    #allocation6 [shape = 's32[1]{0}', space=sflag, size = 0x4, scoped, tag = 'scoped memory for tpu_custom_call.1']
    #allocation7 [shape = 'u8[4096]{0}', space=vmem, size = 0x1000, scoped, tag = 'output window, operand 0, single buffered']
    %8 = vsyncpa [#allocation3], 0
    %9 = vsyncpa [#allocation6], 0
    %10 = vsyncpa [#allocation4], 0
    // Predicated region
    $region2: #{tpu_custom_call.1} parent=1 // pred_check
      _
    $region3: #{tpu_custom_call.1} parent=1 // pred_check_branch
      %12 = sbr.rel (0) target = $region5
    $region4: #{tpu_custom_call.1} parent=1 // pred_region
      %14 = vsyncadd [#allocation3], 0
      %s16 = sshll.u32 %s0, 4
      %s17 = int_to_ptr.hbm [resolvable:$true] %s16
      %s18 = sshll.u32 [#allocation2], 4
      %s19 = int_to_ptr.vmem [resolvable:$true] %s18
      %21 = dma.hbm_to_vmem [thread:$0]  %s17, 128, %s19, [#allocation3]
    $region5: #{tpu_custom_call.1} parent=1 // pred_fallthru
      _
    // Predicated region
    $region6: #{tpu_custom_call.1} parent=1 // pred_check
      _
    $region7: #{tpu_custom_call.1} parent=1 // pred_check_branch
      %23 = sbr.rel (0) target = $region9
    $region8: #{tpu_custom_call.1} parent=1 // pred_region
      %25 = vsyncadd [#allocation6], 0
      %s26 = sshll.u32 %s1, 4
      %s27 = int_to_ptr.hbm [resolvable:$true] %s26
      %s28 = sshll.u32 [#allocation5], 4
      %s29 = int_to_ptr.vmem [resolvable:$true] %s28
      %34 = dma.hbm_to_vmem [thread:$0]  %s27, 2048, %s29, [#allocation6], 128, 128, 8
    $region9: #{tpu_custom_call.1} parent=1 // pred_fallthru
      _
    // Predicated region
    $region10: #{tpu_custom_call.1} parent=1 // pred_check
      _
    $region11: #{tpu_custom_call.1} parent=1 // pred_check_branch
      %36 = sbr.rel (0) target = $region13
    $region12: #{tpu_custom_call.1} parent=1 // pred_region
      _
    $region13: #{tpu_custom_call.1} parent=1 // pred_fallthru
      _
    // Predicated region
    $region14: #{tpu_custom_call.1} parent=1 // pred_check
      _
    $region15: #{tpu_custom_call.1} parent=1 // pred_check_branch
      %38 = sbr.rel (0) target = $region17
    $region16: #{tpu_custom_call.1} parent=1 // pred_region
      %40 = dma.done [#allocation3], 128
    $region17: #{tpu_custom_call.1} parent=1 // pred_fallthru
      _
    // Predicated region
    $region18: #{tpu_custom_call.1} parent=1 // pred_check
      _
    $region19: #{tpu_custom_call.1} parent=1 // pred_check_branch
      %42 = sbr.rel (0) target = $region21
    $region20: #{tpu_custom_call.1} parent=1 // pred_region
      %44 = dma.done [#allocation6], 2048
    $region21: #{tpu_custom_call.1} parent=1 // pred_fallthru
      _
    %v45 = vld [vmem:[#allocation2] sm:$0xff]
    %v46 = vld [vmem:[#allocation5] sm:$0xff]
    %v47 = vld [vmem:[#allocation5 + $0x8] sm:$0xff]
    %v48 = vld [vmem:[#allocation5 + $0x10] sm:$0xff]
    %v49 = vld [vmem:[#allocation5 + $0x18] sm:$0xff]
    %v50 = vld [vmem:[#allocation5 + $0x20] sm:$0xff]
    %v51 = vld [vmem:[#allocation5 + $0x28] sm:$0xff]
    %v52 = vld [vmem:[#allocation5 + $0x30] sm:$0xff]
    %v53 = vld [vmem:[#allocation5 + $0x38] sm:$0xff]
    %v54 = vld [vmem:[#allocation5 + $0x40] sm:$0xff]
    %v55 = vld [vmem:[#allocation5 + $0x48] sm:$0xff]
    %v56 = vld [vmem:[#allocation5 + $0x50] sm:$0xff]
    %v57 = vld [vmem:[#allocation5 + $0x58] sm:$0xff]
    %v58 = vld [vmem:[#allocation5 + $0x60] sm:$0xff]
    %v59 = vld [vmem:[#allocation5 + $0x68] sm:$0xff]
    %v60 = vld [vmem:[#allocation5 + $0x70] sm:$0xff]
    %v61 = vld [vmem:[#allocation5 + $0x78] sm:$0xff]
    %v62 = vld [vmem:[%s2] sm:$0x1]
    %v64 = vperm.slane %v62, 0
    %66 = vmatpush.msra.mxu0 %v61
    %67 = vmatpush.msra.mxu0 %v60
    %68 = vmatpush.msra.mxu0 %v59
    %69 = vmatpush.msra.mxu0 %v58
    %70 = vmatpush.msra.mxu0 %v57
    %71 = vmatpush.msra.mxu0 %v56
    %72 = vmatpush.msra.mxu0 %v55
    %73 = vmatpush.msra.mxu0 %v54
    %74 = vmatpush.msra.mxu0 %v53
    %75 = vmatpush.msra.mxu0 %v52
    %76 = vmatpush.msra.mxu0 %v51
    %77 = vmatpush.msra.mxu0 %v50
    %78 = vmatpush.msra.mxu0 %v49
    %79 = vmatpush.msra.mxu0 %v48
    %80 = vmatpush.msra.mxu0 %v47
    %81 = vmatpush.msra.mxu0 %v46
    %82 = vmatmul.f32.gmra.mxu0 %v45
    %v83 = vpop.f32.mrf.mxu0
    %v84 = vadd.f32 %v64, %v83
    %85 = vdwg.mxu0
    %86 = vst [vmem:[#allocation7] sm:$0xff] %v84
    // Predicated region
    $region22: #{tpu_custom_call.1} parent=1 // pred_check
      _
    $region23: #{tpu_custom_call.1} parent=1 // pred_check_branch
      %88 = sbr.rel (0) target = $region25
    $region24: #{tpu_custom_call.1} parent=1 // pred_region
      %90 = vsyncadd [#allocation4], 0
      %s92 = sshll.u32 [#allocation7], 4
      %s93 = int_to_ptr.vmem [resolvable:$true] %s92
      %s94 = sshll.u32 %s3, 4
      %s95 = int_to_ptr.hbm [resolvable:$true] %s94
      %97 = dma.vmem_to_hbm [thread:$0]  %s93, 128, %s95, [#allocation4]
    $region25: #{tpu_custom_call.1} parent=1 // pred_fallthru
      _
    // Predicated region
    $region26: #{tpu_custom_call.1} parent=1 // pred_check
      _
    $region27: #{tpu_custom_call.1} parent=1 // pred_check_branch
      %99 = sbr.rel (0) target = $region29
    $region28: #{tpu_custom_call.1} parent=1 // pred_region
      %101 = dma.done [#allocation4], 128
    $region29: #{tpu_custom_call.1} parent=1 // pred_fallthru
      _
    %102 = vsyncpa [#allocation3], 1
    %103 = vsyncpa [#allocation6], 1
    %104 = vsyncpa [#allocation4], 1

</llo_original>
